<compile_context>
chip_gen: v5e
topology: v5e:2x2
jax: 0.10.0
libtpu: 0.0.40
codegen_flags: <defaults>
</compile_context>

<pallas_src>
import jax
import jax.numpy as jnp
from jax.experimental import pallas as pl
from jax.experimental.pallas import tpu as pltpu

NUM_STATE = 3          # Pendulum-v1 observation_space.shape[0]
H1, H2 = 64, 8
NUM_HEADS = 2          # [mu, sigma] fused
NEG_SLOPE = 0.01       # F.leaky_relu default


def _leaky_relu(x):
    return jnp.where(x > 0, x, NEG_SLOPE * x)


def _round_up(n, m):
    return ((n + m - 1) // m) * m


def actor_kernel(x_ref, w1_ref, b1_ref, w2_ref, b2_ref, wh_ref, bh_ref, out_ref):
    x = x_ref[...].astype(jnp.float32)          # (TB, 3)
    w1 = w1_ref[...]                            # (3, 64)
    b1 = b1_ref[...]                            # (1, 64)  hoisted, read once

    # Layer 1: K=3 contraction as VPU broadcast-FMAs (keeps the MXU free).
    h1 = (x[:, 0:1] * w1[0:1, :]
          + x[:, 1:2] * w1[1:2, :]
          + x[:, 2:3] * w1[2:3, :]
          + b1)                                 # (TB, 64)
    h1 = _leaky_relu(h1)

    # Layer 2: 64 -> 8, the only matmul worth the MXU.
    h2 = jnp.dot(h1, w2_ref[...], preferred_element_type=jnp.float32)  # (TB, 8)
    h2 = _leaky_relu(h2 + b2_ref[...])

    # Fused heads: 8 -> 2 (col 0 = mu, col 1 = sigma), abs() only on sigma lane.
    heads = jnp.dot(h2, wh_ref[...], preferred_element_type=jnp.float32)  # (TB, 2)
    heads = heads + bh_ref[...]
    col = jax.lax.broadcasted_iota(jnp.int32, heads.shape, 1)
    heads = jnp.where(col == 0, heads, jnp.abs(heads))

    out_ref[...] = heads.astype(out_ref.dtype)


def actor_forward(x, params, *, block_b=512):
    """x: (B, NUM_STATE) f32 -> (mu (B,1), sigma (B,1))."""
    B = x.shape[0]
    # Batch tile: multiple of 8 sublanes, capped so (TB, 64) fp32 h1 stays in-register.
    TB = min(block_b, _round_up(B, 8))
    B_pad = _round_up(B, TB)
    if B_pad != B:
        x = jnp.pad(x, ((0, B_pad - B), (0, 0)))

    # Fuse the two heads into a single (8, 2) weight / (1, 2) bias.
    w_heads = jnp.concatenate([params["wmu"], params["wsig"]], axis=1)   # (8, 2)
    b_heads = jnp.concatenate([params["bmu"], params["bsig"]], axis=1)   # (1, 2)

    resident = lambda shape: pl.BlockSpec(shape, lambda i: (0, 0))

    heads = pl.pallas_call(
        actor_kernel,
        out_shape=jax.ShapeDtypeStruct((B_pad, NUM_HEADS), jnp.float32),
        grid=(B_pad // TB,),
        in_specs=[
            pl.BlockSpec((TB, NUM_STATE), lambda i: (i, 0)),   # x, batch-tiled
            resident((NUM_STATE, H1)),                         # w1
            resident((1, H1)),                                 # b1
            resident((H1, H2)),                                # w2
            resident((1, H2)),                                 # b2
            resident((H2, NUM_HEADS)),                         # w_heads
            resident((1, NUM_HEADS)),                          # b_heads
        ],
        out_specs=pl.BlockSpec((TB, NUM_HEADS), lambda i: (i, 0)),
        compiler_params=pltpu.CompilerParams(
            dimension_semantics=("parallel",)),
    )(x, params["w1"], params["b1"], params["w2"], params["b2"],
      w_heads, b_heads)

    heads = heads[:B]
    return heads[:, 0:1], heads[:, 1:2]


def init_params(key):
    """Deterministic init mimicking torch.nn.Linear default (uniform +/- 1/sqrt(fan_in)).
    Weights stored as (in, out); biases stored as (1, out)."""
    def linear(key, fan_in, fan_out):
        kw, kb = jax.random.split(key)
        bound = 1.0 / jnp.sqrt(fan_in)
        w = jax.random.uniform(kw, (fan_in, fan_out), jnp.float32, -bound, bound)
        b = jax.random.uniform(kb, (1, fan_out), jnp.float32, -bound, bound)
        return w, b

    k1, k2, k3, k4 = jax.random.split(key, 4)
    w1, b1 = linear(k1, NUM_STATE, H1)
    w2, b2 = linear(k2, H1, H2)
    wmu, bmu = linear(k3, H2, 1)
    wsig, bsig = linear(k4, H2, 1)
    return dict(w1=w1, b1=b1, w2=w2, b2=b2,
                wmu=wmu, bmu=bmu, wsig=wsig, bsig=bsig)


def reference_forward(x, p):
    h1 = x @ p["w1"] + p["b1"]
    h1 = jnp.where(h1 > 0, h1, NEG_SLOPE * h1)
    h2 = h1 @ p["w2"] + p["b2"]
    h2 = jnp.where(h2 > 0, h2, NEG_SLOPE * h2)
    mu = h2 @ p["wmu"] + p["bmu"]
    sigma = jnp.abs(h2 @ p["wsig"] + p["bsig"])
    return mu, sigma


if __name__ == "__main__":
    key = jax.random.PRNGKey(0)
    kx, kp, kx2 = jax.random.split(key, 3)
    params = init_params(kp)

    # Small batch (single grid step).
    B = 8
    x = jax.random.normal(kx, (B, NUM_STATE), jnp.float32)
    mu, sigma = actor_forward(x, params)
    jax.block_until_ready((mu, sigma))
    mu_ref, sigma_ref = reference_forward(x, params)
    assert mu.shape == (B, 1) and sigma.shape == (B, 1)
    assert jnp.allclose(mu, mu_ref, atol=1e-5, rtol=1e-5)
    assert jnp.allclose(sigma, sigma_ref, atol=1e-5, rtol=1e-5)
    assert bool(jnp.all(sigma >= 0))

    # Larger, non-multiple batch to exercise the grid + wrapper padding.
    B2 = 200
    x2 = jax.random.normal(kx2, (B2, NUM_STATE), jnp.float32)
    mu2, sigma2 = actor_forward(x2, params, block_b=64)
    jax.block_until_ready((mu2, sigma2))
    mu2_ref, sigma2_ref = reference_forward(x2, params)
    assert mu2.shape == (B2, 1) and sigma2.shape == (B2, 1)
    assert jnp.allclose(mu2, mu2_ref, atol=1e-5, rtol=1e-5)
    assert jnp.allclose(sigma2, sigma2_ref, atol=1e-5, rtol=1e-5)
    assert bool(jnp.all(sigma2 >= 0))

    print("KERNEL_OK")
</pallas_src>

<mosaic_0001>
module attributes {stable_mosaic.version = 11 : i64} {
  func.func @actor_kernel(%arg0: i32, %arg1: memref<8x3xf32, #tpu.memory_space<vmem>>, %arg2: memref<3x64xf32, #tpu.memory_space<vmem>>, %arg3: memref<1x64xf32, #tpu.memory_space<vmem>>, %arg4: memref<64x8xf32, #tpu.memory_space<vmem>>, %arg5: memref<1x8xf32, #tpu.memory_space<vmem>>, %arg6: memref<8x2xf32, #tpu.memory_space<vmem>>, %arg7: memref<1x2xf32, #tpu.memory_space<vmem>>, %arg8: memref<8x2xf32, #tpu.memory_space<vmem>>) attributes {dimension_semantics = [#tpu.dimension_semantics<parallel>], iteration_bounds = array<i64: 1>, scalar_prefetch = 0 : i64, scratch_operands = 0 : i64, tpu.core_type = #tpu.core_type<tc>, window_params = [{transform_indices = @transform_0, window_bounds = array<i64: 8, 3>}, {pipeline_mode = #tpu.pipeline_mode<synchronous>, transform_indices = @transform_1, window_bounds = array<i64: 3, 64>}, {pipeline_mode = #tpu.pipeline_mode<synchronous>, transform_indices = @transform_2, window_bounds = array<i64: 1, 64>}, {pipeline_mode = #tpu.pipeline_mode<synchronous>, transform_indices = @transform_3, window_bounds = array<i64: 64, 8>}, {pipeline_mode = #tpu.pipeline_mode<synchronous>, transform_indices = @transform_4, window_bounds = array<i64: 1, 8>}, {pipeline_mode = #tpu.pipeline_mode<synchronous>, transform_indices = @transform_5, window_bounds = array<i64: 8, 2>}, {pipeline_mode = #tpu.pipeline_mode<synchronous>, transform_indices = @transform_6, window_bounds = array<i64: 1, 2>}, {transform_indices = @transform_7, window_bounds = array<i64: 8, 2>}]} {
    %c0 = arith.constant 0 : index
    %c0_0 = arith.constant 0 : index
    %0 = vector.load %arg1[%c0, %c0_0] : memref<8x3xf32, #tpu.memory_space<vmem>>, vector<8x3xf32>
    %c0_1 = arith.constant 0 : index
    %c0_2 = arith.constant 0 : index
    %1 = vector.load %arg2[%c0_1, %c0_2] : memref<3x64xf32, #tpu.memory_space<vmem>>, vector<3x64xf32>
    %c0_3 = arith.constant 0 : index
    %c0_4 = arith.constant 0 : index
    %2 = vector.load %arg3[%c0_3, %c0_4] : memref<1x64xf32, #tpu.memory_space<vmem>>, vector<1x64xf32>
    %3 = vector.extract_strided_slice %0 {offsets = [0, 0], sizes = [8, 1], strides = [1, 1]} : vector<8x3xf32> to vector<8x1xf32>
    %4 = vector.extract_strided_slice %1 {offsets = [0, 0], sizes = [1, 64], strides = [1, 1]} : vector<3x64xf32> to vector<1x64xf32>
    %5 = vector.broadcast %3 : vector<8x1xf32> to vector<8x64xf32>
    %6 = vector.broadcast %4 : vector<1x64xf32> to vector<8x64xf32>
    %7 = arith.mulf %5, %6 : vector<8x64xf32>
    %8 = vector.extract_strided_slice %0 {offsets = [0, 1], sizes = [8, 1], strides = [1, 1]} : vector<8x3xf32> to vector<8x1xf32>
    %9 = vector.extract_strided_slice %1 {offsets = [1, 0], sizes = [1, 64], strides = [1, 1]} : vector<3x64xf32> to vector<1x64xf32>
    %10 = vector.broadcast %8 : vector<8x1xf32> to vector<8x64xf32>
    %11 = vector.broadcast %9 : vector<1x64xf32> to vector<8x64xf32>
    %12 = arith.mulf %10, %11 : vector<8x64xf32>
    %13 = arith.addf %7, %12 : vector<8x64xf32>
    %14 = vector.extract_strided_slice %0 {offsets = [0, 2], sizes = [8, 1], strides = [1, 1]} : vector<8x3xf32> to vector<8x1xf32>
    %15 = vector.extract_strided_slice %1 {offsets = [2, 0], sizes = [1, 64], strides = [1, 1]} : vector<3x64xf32> to vector<1x64xf32>
    %16 = vector.broadcast %14 : vector<8x1xf32> to vector<8x64xf32>
    %17 = vector.broadcast %15 : vector<1x64xf32> to vector<8x64xf32>
    %18 = arith.mulf %16, %17 : vector<8x64xf32>
    %19 = arith.addf %13, %18 : vector<8x64xf32>
    %20 = vector.broadcast %2 : vector<1x64xf32> to vector<8x64xf32>
    %21 = arith.addf %19, %20 : vector<8x64xf32>
    %cst = arith.constant 0.000000e+00 : f32
    %22 = vector.broadcast %cst : f32 to vector<8x64xf32>
    %23 = arith.cmpf ogt, %21, %22 : vector<8x64xf32>
    %cst_5 = arith.constant 0.00999999977 : f32
    %24 = vector.broadcast %cst_5 : f32 to vector<8x64xf32>
    %25 = arith.mulf %24, %21 : vector<8x64xf32>
    %26 = arith.select %23, %21, %25 : vector<8x64xi1>, vector<8x64xf32>
    %c0_6 = arith.constant 0 : index
    %c0_7 = arith.constant 0 : index
    %27 = vector.load %arg4[%c0_6, %c0_7] : memref<64x8xf32, #tpu.memory_space<vmem>>, vector<64x8xf32>
    %cst_8 = arith.constant dense<0.000000e+00> : vector<8x8xf32>
    %28 = tpu.matmul %26, %27, %cst_8 {dimension_numbers = #tpu.dot_dimension_numbers<[1], [0], [0], [1], [0, 0, 1, 1], [], []>} : vector<8x64xf32>, vector<64x8xf32>, vector<8x8xf32> -> vector<8x8xf32>
    %c0_9 = arith.constant 0 : index
    %c0_10 = arith.constant 0 : index
    %29 = vector.load %arg5[%c0_9, %c0_10] : memref<1x8xf32, #tpu.memory_space<vmem>>, vector<1x8xf32>
    %30 = vector.broadcast %29 : vector<1x8xf32> to vector<8x8xf32>
    %31 = arith.addf %28, %30 : vector<8x8xf32>
    %cst_11 = arith.constant 0.000000e+00 : f32
    %32 = vector.broadcast %cst_11 : f32 to vector<8x8xf32>
    %33 = arith.cmpf ogt, %31, %32 : vector<8x8xf32>
    %cst_12 = arith.constant 0.00999999977 : f32
    %34 = vector.broadcast %cst_12 : f32 to vector<8x8xf32>
    %35 = arith.mulf %34, %31 : vector<8x8xf32>
    %36 = arith.select %33, %31, %35 : vector<8x8xi1>, vector<8x8xf32>
    %c0_13 = arith.constant 0 : index
    %c0_14 = arith.constant 0 : index
    %37 = vector.load %arg6[%c0_13, %c0_14] : memref<8x2xf32, #tpu.memory_space<vmem>>, vector<8x2xf32>
    %cst_15 = arith.constant dense<0.000000e+00> : vector<8x2xf32>
    %38 = tpu.matmul %36, %37, %cst_15 {dimension_numbers = #tpu.dot_dimension_numbers<[1], [0], [0], [1], [0, 0, 1, 1], [], []>} : vector<8x8xf32>, vector<8x2xf32>, vector<8x2xf32> -> vector<8x2xf32>
    %c0_16 = arith.constant 0 : index
    %c0_17 = arith.constant 0 : index
    %39 = vector.load %arg7[%c0_16, %c0_17] : memref<1x2xf32, #tpu.memory_space<vmem>>, vector<1x2xf32>
    %40 = vector.broadcast %39 : vector<1x2xf32> to vector<8x2xf32>
    %41 = arith.addf %38, %40 : vector<8x2xf32>
    %42 = tpu.iota {dimensions = array<i32: 1>} : vector<8x2xi32>
    %c0_i32 = arith.constant 0 : i32
    %43 = vector.broadcast %c0_i32 : i32 to vector<8x2xi32>
    %44 = arith.cmpi eq, %42, %43 : vector<8x2xi32>
    %45 = math.absf %41 : vector<8x2xf32>
    %46 = arith.select %44, %41, %45 : vector<8x2xi1>, vector<8x2xf32>
    %c0_18 = arith.constant 0 : index
    %c0_19 = arith.constant 0 : index
    %47 = vector.load %arg8[%c0_18, %c0_19] : memref<8x2xf32, #tpu.memory_space<vmem>>, vector<8x2xf32>
    tpu.vector_store %arg8[%c0_18, %c0_19], %46 {strides = array<i32>} : memref<8x2xf32, #tpu.memory_space<vmem>>, vector<8x2xf32>,
    return
  }
  func.func @transform_0(%arg0: i32) -> (i32, i32) {
    %c0_i32 = arith.constant 0 : i32
    %c0_i32_0 = arith.constant 0 : i32
    return %arg0, %c0_i32 : i32, i32
  }
  func.func @transform_1(%arg0: i32) -> (i32, i32) {
    %c0_i32 = arith.constant 0 : i32
    %c0_i32_0 = arith.constant 0 : i32
    %c0_i32_1 = arith.constant 0 : i32
    return %c0_i32, %c0_i32_0 : i32, i32
  }
  func.func @transform_2(%arg0: i32) -> (i32, i32) {
    %c0_i32 = arith.constant 0 : i32
    %c0_i32_0 = arith.constant 0 : i32
    %c0_i32_1 = arith.constant 0 : i32
    return %c0_i32, %c0_i32_0 : i32, i32
  }
  func.func @transform_3(%arg0: i32) -> (i32, i32) {
    %c0_i32 = arith.constant 0 : i32
    %c0_i32_0 = arith.constant 0 : i32
    %c0_i32_1 = arith.constant 0 : i32
    return %c0_i32, %c0_i32_0 : i32, i32
  }
  func.func @transform_4(%arg0: i32) -> (i32, i32) {
    %c0_i32 = arith.constant 0 : i32
    %c0_i32_0 = arith.constant 0 : i32
    %c0_i32_1 = arith.constant 0 : i32
    return %c0_i32, %c0_i32_0 : i32, i32
  }
  func.func @transform_5(%arg0: i32) -> (i32, i32) {
    %c0_i32 = arith.constant 0 : i32
    %c0_i32_0 = arith.constant 0 : i32
    %c0_i32_1 = arith.constant 0 : i32
    return %c0_i32, %c0_i32_0 : i32, i32
  }
  func.func @transform_6(%arg0: i32) -> (i32, i32) {
    %c0_i32 = arith.constant 0 : i32
    %c0_i32_0 = arith.constant 0 : i32
    %c0_i32_1 = arith.constant 0 : i32
    return %c0_i32, %c0_i32_0 : i32, i32
  }
  func.func @transform_7(%arg0: i32) -> (i32, i32) {
    %c0_i32 = arith.constant 0 : i32
    %c0_i32_0 = arith.constant 0 : i32
    return %arg0, %c0_i32 : i32, i32
  }
}

</mosaic_0001>

<llo_original>
// kernel: tpu_custom_call.1
$region0: #{tpu_custom_call.1}
  #allocation0 [shape = 'u32[]', space=smem, size = 0x4, offset = 0x4, fixed_abs, tag = 'smem constant byte address 0x4 - core index']
  #allocation1 [shape = 'u32[72,128]{1,0:T(1,128)}', space=vmem, size = 0x9000, scoped, tag = 'internal scratch']
  %s0 = inlined_call_operand.vmem [shape: f32[8,3], index: 0, kind: input, shape index: {}]
  %s1 = inlined_call_operand.vmem [shape: f32[3,64], index: 1, kind: input, shape index: {}]
  %s2 = inlined_call_operand.vmem [shape: f32[1,64], index: 2, kind: input, shape index: {}]
  %s3 = inlined_call_operand.vmem [shape: f32[64,8], index: 3, kind: input, shape index: {}]
  %s4 = inlined_call_operand.vmem [shape: f32[1,8], index: 4, kind: input, shape index: {}]
  %s5 = inlined_call_operand.vmem [shape: f32[8,2], index: 5, kind: input, shape index: {}]
  %s6 = inlined_call_operand.vmem [shape: f32[1,2], index: 6, kind: input, shape index: {}]
  %s7 = inlined_call_operand.vmem [shape: f32[8,2], index: 7, kind: output, shape index: {}]
  %s8 = sld [smem:[#allocation0]]
  $region38: #{tpu_custom_call.1} parent=0
    _
  %s10 = ssub.s32 1, %s8
  %s11 = scalar_select 0, %s10, %s8
  // Predicated region
  $region2: #{tpu_custom_call.1} parent=0 // pred_check
    _
  $region3: #{tpu_custom_call.1} parent=0 // pred_check_branch
    %13 = sbr.rel (0) target = $region5
  $region4: #{tpu_custom_call.1} parent=0 // pred_region
    _
  $region5: #{tpu_custom_call.1} parent=0 // pred_fallthru
    _
  // Predicated region
  $region6: #{tpu_custom_call.1} parent=0 // pred_check
    _
  $region7: #{tpu_custom_call.1} parent=0 // pred_check_branch
    %15 = sbr.rel (0) target = $region9
  $region8: #{tpu_custom_call.1} parent=0 // pred_region
    _
  $region9: #{tpu_custom_call.1} parent=0 // pred_fallthru
    _
  // Predicated region
  $region10: #{tpu_custom_call.1} parent=0 // pred_check
    _
  $region11: #{tpu_custom_call.1} parent=0 // pred_check_branch
    %17 = sbr.rel (0) target = $region13
  $region12: #{tpu_custom_call.1} parent=0 // pred_region
    _
  $region13: #{tpu_custom_call.1} parent=0 // pred_fallthru
    _
  // Predicated region
  $region14: #{tpu_custom_call.1} parent=0 // pred_check
    _
  $region15: #{tpu_custom_call.1} parent=0 // pred_check_branch
    %19 = sbr.rel (0) target = $region17
  $region16: #{tpu_custom_call.1} parent=0 // pred_region
    _
  $region17: #{tpu_custom_call.1} parent=0 // pred_fallthru
    _
  // Predicated region
  $region18: #{tpu_custom_call.1} parent=0 // pred_check
    _
  $region19: #{tpu_custom_call.1} parent=0 // pred_check_branch
    %21 = sbr.rel (0) target = $region21
  $region20: #{tpu_custom_call.1} parent=0 // pred_region
    _
  $region21: #{tpu_custom_call.1} parent=0 // pred_fallthru
    _
  // Predicated region
  $region22: #{tpu_custom_call.1} parent=0 // pred_check
    _
  $region23: #{tpu_custom_call.1} parent=0 // pred_check_branch
    %23 = sbr.rel (0) target = $region25
  $region24: #{tpu_custom_call.1} parent=0 // pred_region
    _
  $region25: #{tpu_custom_call.1} parent=0 // pred_fallthru
    _
  // Predicated region
  $region26: #{tpu_custom_call.1} parent=0 // pred_check
    _
  $region27: #{tpu_custom_call.1} parent=0 // pred_check_branch
    %25 = sbr.rel (0) target = $region29
  $region28: #{tpu_custom_call.1} parent=0 // pred_region
    _
  $region29: #{tpu_custom_call.1} parent=0 // pred_fallthru
    _
  %v26 = vld [vmem:[%s0] sm:$0xff]
  %v27 = vld [vmem:[%s1] sm:$0x7]
  %v28 = vld [vmem:[%s2] sm:$0x1]
  %30 = vset.pattern.permute.xlu0 0
  %31 = vperm.xlu0 %30, %v26
  %v32 = vpop.permute.xlu0 %31
  %v34 = vperm.slane %v27, 0
  %v35 = vmul.f32 %v32, %v34
  %36 = vset.pattern.permute.xlu0 1
  %37 = vperm.xlu0 %36, %v26
  %v38 = vpop.permute.xlu0 %37
  %v40 = vperm.slane %v27, 1
  %v41 = vmul.f32 %v38, %v40
  %v42 = vadd.f32 %v35, %v41
  %43 = vset.pattern.permute.xlu0 2
  %44 = vperm.xlu0 %43, %v26
  %v45 = vpop.permute.xlu0 %44
  %v47 = vperm.slane %v27, 2
  %v48 = vmul.f32 %v45, %v47
  %v49 = vadd.f32 %v42, %v48
  %v51 = vperm.slane %v28, 0
  %v53 = vadd.f32 %v49, %v51
  %vm54 = vcmp.gt.f32.partialorder %v53, 0.0
  %v55 = vmul.f32 %v53, 0.01
  %v56 = vsel %vm54, %v53, %v55
  %v57 = vld [vmem:[%s3] sm:$0xff]
  %v58 = vld [vmem:[%s3 + $0x8] sm:$0xff]
  %v59 = vld [vmem:[%s3 + $0x10] sm:$0xff]
  %v60 = vld [vmem:[%s3 + $0x18] sm:$0xff]
  %v61 = vld [vmem:[%s3 + $0x20] sm:$0xff]
  %v62 = vld [vmem:[%s3 + $0x28] sm:$0xff]
  %v63 = vld [vmem:[%s3 + $0x30] sm:$0xff]
  %v64 = vld [vmem:[%s3 + $0x38] sm:$0xff]
  %v65 = vld [vmem:[%s4] sm:$0x1]
  %v67 = vperm.slane %v65, 0
  %vm69 = vcmask 523264
  %v71 = vsel %vm69, %v56, 0
  %73 = vmatpush.msra.mxu0 0.0
  %74 = vmatpush.msra.mxu0 0.0
  %75 = vmatpush.msra.mxu0 0.0
  %76 = vmatpush.msra.mxu0 0.0
  %77 = vmatpush.msra.mxu0 0.0
  %78 = vmatpush.msra.mxu0 0.0
  %79 = vmatpush.msra.mxu0 0.0
  %80 = vmatpush.msra.mxu0 0.0
  %81 = vmatpush.msra.mxu0 %v64
  %82 = vmatpush.msra.mxu0 %v63
  %83 = vmatpush.msra.mxu0 %v62
  %84 = vmatpush.msra.mxu0 %v61
  %85 = vmatpush.msra.mxu0 %v60
  %86 = vmatpush.msra.mxu0 %v59
  %87 = vmatpush.msra.mxu0 %v58
  %88 = vmatpush.msra.mxu0 %v57
  %89 = vmatmul.f32.gmra.mxu0 %v71
  %v90 = vpop.f32.mrf.mxu0
  %v91 = vadd.f32 %v67, %v90
  %92 = vdwg.mxu0
  %vm93 = vcmp.gt.f32.partialorder %v91, 0.0
  %v94 = vmul.f32 %v91, 0.01
  %v95 = vsel %vm93, %v91, %v94
  %v96 = vld [vmem:[%s5] sm:$0xff]
  %v97 = vld [vmem:[%s6] sm:$0x1]
  %v99 = vperm.slane %v97, 0
  %vm101 = vcmask 64512
  %v103 = vsel %vm101, %v95, 0
  %105 = vmatpush.msra.mxu0 0.0
  %106 = vmatpush.msra.mxu0 0.0
  %107 = vmatpush.msra.mxu0 0.0
  %108 = vmatpush.msra.mxu0 0.0
  %109 = vmatpush.msra.mxu0 0.0
  %110 = vmatpush.msra.mxu0 0.0
  %111 = vmatpush.msra.mxu0 0.0
  %112 = vmatpush.msra.mxu0 0.0
  %113 = vmatpush.msra.mxu0 0.0
  %114 = vmatpush.msra.mxu0 0.0
  %115 = vmatpush.msra.mxu0 0.0
  %116 = vmatpush.msra.mxu0 0.0
  %117 = vmatpush.msra.mxu0 0.0
  %118 = vmatpush.msra.mxu0 0.0
  %119 = vmatpush.msra.mxu0 0.0
  %120 = vmatpush.msra.mxu0 %v96
  %121 = vmatmul.f32.gmra.mxu0 %v103
  %v122 = vpop.f32.mrf.mxu0
  %v123 = vadd.f32 %v99, %v122
  %124 = vdwg.mxu0
  %v125 = vlaneseq
  %v126 = vand.u32 %v125, 127
  %vm127 = vcmp.eq.s32.totalorder %v126, 0
  %v128 = vand.u32 2147483647, %v123
  %v129 = vsel %vm127, %v123, %v128
  %vm130 = vcmask 15360
  %131 = vst.msk [vmem:[%s7] sm:$0xff] %vm130, %v129
  // Predicated region
  $region30: #{tpu_custom_call.1} parent=0 // pred_check
    _
  $region31: #{tpu_custom_call.1} parent=0 // pred_check_branch
    %133 = sbr.rel (0) target = $region33
  $region32: #{tpu_custom_call.1} parent=0 // pred_region
    _
  $region33: #{tpu_custom_call.1} parent=0 // pred_fallthru
    _
  // Predicated region
  $region34: #{tpu_custom_call.1} parent=0 // pred_check
    _
  $region35: #{tpu_custom_call.1} parent=0 // pred_check_branch
    %135 = sbr.rel (0) target = $region37
  $region36: #{tpu_custom_call.1} parent=0 // pred_region
    _
  $region37: #{tpu_custom_call.1} parent=0 // pred_fallthru
    _

</llo_original>
